<compile_context>
chip_gen: v6e
topology: v6e:2x2x1
jax: 0.10.0
libtpu: 0.0.40
codegen_flags: <defaults>
</compile_context>

<pallas_src>
import math
import functools

import jax
import jax.numpy as jnp
from jax import lax
from jax.experimental import pallas as pl
from jax.experimental.pallas import tpu as pltpu


# ---------------------------------------------------------------------------
# Tiling helpers
# ---------------------------------------------------------------------------
def _round_up(x, m):
    return ((x + m - 1) // m) * m


def _pick_tile(dim, minimum, candidates):
    """Largest candidate tile that exactly divides round_up(dim, minimum)."""
    padded = _round_up(dim, minimum)
    for t in candidates:
        if padded % t == 0:
            return t, padded
    return minimum, padded  # unreachable: minimum always divides `padded`


def _vmem_limit_bytes(tb, tn, tk, itemsize, n_weight_tensors):
    # Double-buffered inputs + double-buffered output + f32 accumulator, 2x headroom.
    in_tile = itemsize * (tb * tk + n_weight_tensors * tn * tk + tk + 4 * tn)
    out_tile = itemsize * tb * tn
    acc = 4 * tb * tn
    need = 2 * in_tile + 2 * out_tile + acc
    return int(min(max(2 * need, 16 * 1024 * 1024), 40 * 1024 * 1024))


# ---------------------------------------------------------------------------
# Kernels
# ---------------------------------------------------------------------------
def _noisy_linear_train_kernel(x_ref, wmu_ref, wsig_ref, eps_in_ref,
                               eps_out_col_ref, eps_out_row_ref,
                               bmu_ref, bsig_ref, o_ref, acc_ref):
    k = pl.program_id(2)

    @pl.when(k == 0)
    def _():
        acc_ref[...] = jnp.zeros_like(acc_ref)

    # Factorized noise tile formed on the VPU (free under DMA/MXU); the full
    # (N, K) epsilon is never read from HBM.
    w_eps = eps_out_col_ref[...] * eps_in_ref[...]           # (tn,1)*(1,tk) -> (tn,tk)
    w_eff = wmu_ref[...] + wsig_ref[...] * w_eps             # (tn, tk)

    # Contract K of x with K of w_eff directly; no in-kernel transpose.
    acc_ref[...] += lax.dot_general(
        x_ref[...], w_eff,
        dimension_numbers=(((1,), (1,)), ((), ())),
        preferred_element_type=jnp.float32)

    @pl.when(k == pl.num_programs(2) - 1)
    def _():
        b_eff = bmu_ref[...] + bsig_ref[...] * eps_out_row_ref[...]   # (1, tn)
        o_ref[...] = (acc_ref[...] + b_eff).astype(o_ref.dtype)


def _linear_eval_kernel(x_ref, wmu_ref, bmu_ref, o_ref, acc_ref):
    k = pl.program_id(2)

    @pl.when(k == 0)
    def _():
        acc_ref[...] = jnp.zeros_like(acc_ref)

    acc_ref[...] += lax.dot_general(
        x_ref[...], wmu_ref[...],
        dimension_numbers=(((1,), (1,)), ((), ())),
        preferred_element_type=jnp.float32)

    @pl.when(k == pl.num_programs(2) - 1)
    def _():
        o_ref[...] = (acc_ref[...] + bmu_ref[...]).astype(o_ref.dtype)


# ---------------------------------------------------------------------------
# Wrapper
# ---------------------------------------------------------------------------
def noisy_linear_forward(x, weight_mu, weight_sigma, eps_in, eps_out,
                         bias_mu, bias_sigma, *, training=True):
    """Pallas forward for NoisyLinear with factorized (never-materialized) noise.

    x:        (B, K) float32
    weight_*: (N, K)
    bias_*:   (N,)
    eps_in:   (K,)  — PyTorch buffer weight_epsilon == outer(eps_out, eps_in)
    eps_out:  (N,)  — PyTorch buffer bias_epsilon   == eps_out
    returns:  (B, N)
    """
    B, K = x.shape
    N = weight_mu.shape[0]
    dtype = x.dtype
    itemsize = jnp.dtype(dtype).itemsize

    tb, Bp = _pick_tile(B, 8, (256, 128, 64, 32, 16, 8))
    tn, Np = _pick_tile(N, 128, (512, 256, 128))
    tk, Kp = _pick_tile(K, 128, (512, 256, 128))
    grid = (Bp // tb, Np // tn, Kp // tk)

    pad2 = lambda a, r, c: jnp.pad(a, ((0, r - a.shape[0]), (0, c - a.shape[1])))

    xp = pad2(x, Bp, Kp)
    wmu = pad2(weight_mu, Np, Kp)
    bmu = pad2(bias_mu.reshape(1, N), 1, Np)

    x_spec = pl.BlockSpec((tb, tk), lambda b, i, k: (b, k))
    w_spec = pl.BlockSpec((tn, tk), lambda b, i, k: (i, k))
    row_n_spec = pl.BlockSpec((1, tn), lambda b, i, k: (0, i))
    out_spec = pl.BlockSpec((tb, tn), lambda b, i, k: (b, i))
    out_shape = jax.ShapeDtypeStruct((Bp, Np), dtype)
    scratch = [pltpu.VMEM((tb, tn), jnp.float32)]

    n_w = 2 if training else 1
    compiler_params = pltpu.CompilerParams(
        dimension_semantics=("parallel", "parallel", "arbitrary"),
        vmem_limit_bytes=_vmem_limit_bytes(tb, tn, tk, itemsize, n_w))

    if training:
        wsig = pad2(weight_sigma, Np, Kp)
        eps_in_row = pad2(eps_in.reshape(1, K), 1, Kp)
        eps_out_col = pad2(eps_out.reshape(N, 1), Np, 1)
        eps_out_row = pad2(eps_out.reshape(1, N), 1, Np)
        bsig = pad2(bias_sigma.reshape(1, N), 1, Np)

        cost = pl.CostEstimate(
            flops=2 * Bp * Np * Kp + 3 * Np * Kp,
            transcendentals=0,
            bytes_accessed=itemsize * (Bp * Kp + 2 * Np * Kp + Kp + 4 * Np + Bp * Np))

        out = pl.pallas_call(
            _noisy_linear_train_kernel,
            out_shape=out_shape,
            grid_spec=pltpu.PrefetchScalarGridSpec(
                num_scalar_prefetch=0,
                grid=grid,
                in_specs=[
                    x_spec,                                          # x
                    w_spec,                                          # weight_mu
                    w_spec,                                          # weight_sigma
                    pl.BlockSpec((1, tk), lambda b, i, k: (0, k)),   # eps_in  (1, Kp)
                    pl.BlockSpec((tn, 1), lambda b, i, k: (i, 0)),   # eps_out (Np, 1)
                    row_n_spec,                                      # eps_out (1, Np)
                    row_n_spec,                                      # bias_mu
                    row_n_spec,                                      # bias_sigma
                ],
                out_specs=out_spec,
                scratch_shapes=scratch),
            compiler_params=compiler_params,
            cost_estimate=cost,
        )(xp, wmu, wsig, eps_in_row, eps_out_col, eps_out_row, bmu, bsig)
    else:
        # Eval path: plain linear; only x, W_mu, b_mu are streamed from HBM.
        cost = pl.CostEstimate(
            flops=2 * Bp * Np * Kp,
            transcendentals=0,
            bytes_accessed=itemsize * (Bp * Kp + Np * Kp + Np + Bp * Np))

        out = pl.pallas_call(
            _linear_eval_kernel,
            out_shape=out_shape,
            grid_spec=pltpu.PrefetchScalarGridSpec(
                num_scalar_prefetch=0,
                grid=grid,
                in_specs=[x_spec, w_spec, row_n_spec],
                out_specs=out_spec,
                scratch_shapes=scratch),
            compiler_params=compiler_params,
            cost_estimate=cost,
        )(xp, wmu, bmu)

    return out[:B, :N]


# ---------------------------------------------------------------------------
# Parameter / noise initialization matching NoisyLinear.__init__ semantics.
# (reset_noise keeps eps_in / eps_out factorized; weight_epsilon == outer(eps_out, eps_in))
# ---------------------------------------------------------------------------
def _scale_noise(key, size):
    x = jax.random.normal(key, (size,), dtype=jnp.float32)
    return jnp.sign(x) * jnp.sqrt(jnp.abs(x))


def init_noisy_linear(key, in_features, out_features, std_init=0.4):
    k_wmu, k_bmu, k_ein, k_eout = jax.random.split(key, 4)
    mu_range = 1.0 / math.sqrt(in_features)

    weight_mu = jax.random.uniform(
        k_wmu, (out_features, in_features), minval=-mu_range, maxval=mu_range,
        dtype=jnp.float32)
    weight_sigma = jnp.full((out_features, in_features),
                            std_init / math.sqrt(in_features), dtype=jnp.float32)
    bias_mu = jax.random.uniform(
        k_bmu, (out_features,), minval=-mu_range, maxval=mu_range,
        dtype=jnp.float32)
    bias_sigma = jnp.full((out_features,),
                          std_init / math.sqrt(out_features), dtype=jnp.float32)

    eps_in = _scale_noise(k_ein, in_features)      # (K,)
    eps_out = _scale_noise(k_eout, out_features)   # (N,)

    return dict(weight_mu=weight_mu, weight_sigma=weight_sigma,
                bias_mu=bias_mu, bias_sigma=bias_sigma,
                eps_in=eps_in, eps_out=eps_out)


if __name__ == "__main__":
    in_features = 32
    out_features = 64
    batch = 8

    key = jax.random.PRNGKey(0)
    k_params, k_x = jax.random.split(key)

    params = init_noisy_linear(k_params, in_features, out_features, std_init=0.4)
    x = jax.random.normal(k_x, (batch, in_features), dtype=jnp.float32)

    args = (x, params["weight_mu"], params["weight_sigma"],
            params["eps_in"], params["eps_out"],
            params["bias_mu"], params["bias_sigma"])

    fwd_train = jax.jit(functools.partial(noisy_linear_forward, training=True))
    fwd_eval = jax.jit(functools.partial(noisy_linear_forward, training=False))

    y_train = jax.block_until_ready(fwd_train(*args))
    y_eval = jax.block_until_ready(fwd_eval(*args))

    # Reference checks (PyTorch semantics: weight_epsilon = outer(eps_out, eps_in),
    # bias_epsilon = eps_out).
    weight_epsilon = jnp.outer(params["eps_out"], params["eps_in"])
    w_eff = params["weight_mu"] + params["weight_sigma"] * weight_epsilon
    b_eff = params["bias_mu"] + params["bias_sigma"] * params["eps_out"]
    ref_train = x @ w_eff.T + b_eff
    ref_eval = x @ params["weight_mu"].T + params["bias_mu"]

    assert y_train.shape == (batch, out_features)
    assert y_eval.shape == (batch, out_features)
    assert jnp.allclose(y_train, ref_train, atol=1e-4, rtol=1e-5)
    assert jnp.allclose(y_eval, ref_eval, atol=1e-4, rtol=1e-5)

    print("KERNEL_OK")
</pallas_src>

<mosaic_0001>
module attributes {stable_mosaic.version = 11 : i64} {
  func.func @_noisy_linear_train_kernel(%arg0: i32, %arg1: i32, %arg2: i32, %arg3: memref<8x128xf32, #tpu.memory_space<vmem>>, %arg4: memref<128x128xf32, #tpu.memory_space<vmem>>, %arg5: memref<128x128xf32, #tpu.memory_space<vmem>>, %arg6: memref<1x128xf32, #tpu.memory_space<vmem>>, %arg7: memref<128x1xf32, #tpu.memory_space<vmem>>, %arg8: memref<1x128xf32, #tpu.memory_space<vmem>>, %arg9: memref<1x128xf32, #tpu.memory_space<vmem>>, %arg10: memref<1x128xf32, #tpu.memory_space<vmem>>, %arg11: memref<8x128xf32, #tpu.memory_space<vmem>>, %arg12: memref<8x128xf32, #tpu.memory_space<vmem>>) attributes {dimension_semantics = [#tpu.dimension_semantics<parallel>, #tpu.dimension_semantics<parallel>, #tpu.dimension_semantics<arbitrary>], iteration_bounds = array<i64: 1, 1, 1>, scalar_prefetch = 0 : i64, scratch_operands = 1 : i64, tpu.core_type = #tpu.core_type<tc>, window_params = [{transform_indices = @transform_0, window_bounds = array<i64: 8, 128>}, {transform_indices = @transform_1, window_bounds = array<i64: 128, 128>}, {transform_indices = @transform_2, window_bounds = array<i64: 128, 128>}, {transform_indices = @transform_3, window_bounds = array<i64: 1, 128>}, {transform_indices = @transform_4, window_bounds = array<i64: 128, 1>}, {transform_indices = @transform_5, window_bounds = array<i64: 1, 128>}, {transform_indices = @transform_6, window_bounds = array<i64: 1, 128>}, {transform_indices = @transform_7, window_bounds = array<i64: 1, 128>}, {transform_indices = @transform_8, window_bounds = array<i64: 8, 128>}]} {
    %c0_i32 = arith.constant 0 : i32
    %0 = arith.cmpi eq, %arg2, %c0_i32 : i32
    %1 = arith.extui %0 : i1 to i32
    %c0_i32_0 = arith.constant 0 : i32
    %2 = arith.cmpi ne, %1, %c0_i32_0 : i32
    scf.if %2 {
      %cst_16 = arith.constant 0.000000e+00 : f32
      %20 = vector.broadcast %cst_16 : f32 to vector<8x128xf32>
      %c0_17 = arith.constant 0 : index
      %c0_18 = arith.constant 0 : index
      %21 = vector.load %arg12[%c0_17, %c0_18] : memref<8x128xf32, #tpu.memory_space<vmem>>, vector<8x128xf32>
      tpu.vector_store %arg12[%c0_17, %c0_18], %20 {strides = array<i32>} : memref<8x128xf32, #tpu.memory_space<vmem>>, vector<8x128xf32>,
    } else {
    }
    %c0 = arith.constant 0 : index
    %c0_1 = arith.constant 0 : index
    %3 = vector.load %arg7[%c0, %c0_1] : memref<128x1xf32, #tpu.memory_space<vmem>>, vector<128x1xf32>
    %c0_2 = arith.constant 0 : index
    %c0_3 = arith.constant 0 : index
    %4 = vector.load %arg6[%c0_2, %c0_3] : memref<1x128xf32, #tpu.memory_space<vmem>>, vector<1x128xf32>
    %5 = vector.broadcast %3 : vector<128x1xf32> to vector<128x128xf32>
    %6 = vector.broadcast %4 : vector<1x128xf32> to vector<128x128xf32>
    %7 = arith.mulf %5, %6 : vector<128x128xf32>
    %c0_4 = arith.constant 0 : index
    %c0_5 = arith.constant 0 : index
    %8 = vector.load %arg4[%c0_4, %c0_5] : memref<128x128xf32, #tpu.memory_space<vmem>>, vector<128x128xf32>
    %c0_6 = arith.constant 0 : index
    %c0_7 = arith.constant 0 : index
    %9 = vector.load %arg5[%c0_6, %c0_7] : memref<128x128xf32, #tpu.memory_space<vmem>>, vector<128x128xf32>
    %10 = arith.mulf %9, %7 : vector<128x128xf32>
    %11 = arith.addf %8, %10 : vector<128x128xf32>
    %c0_8 = arith.constant 0 : index
    %c0_9 = arith.constant 0 : index
    %12 = vector.load %arg12[%c0_8, %c0_9] : memref<8x128xf32, #tpu.memory_space<vmem>>, vector<8x128xf32>
    %c0_10 = arith.constant 0 : index
    %c0_11 = arith.constant 0 : index
    %13 = vector.load %arg3[%c0_10, %c0_11] : memref<8x128xf32, #tpu.memory_space<vmem>>, vector<8x128xf32>
    %cst = arith.constant dense<0.000000e+00> : vector<8x128xf32>
    %14 = tpu.matmul %13, %11, %cst {dimension_numbers = #tpu.dot_dimension_numbers<[1], [1], [0], [0], [0, 0, 1, 0], [], []>} : vector<8x128xf32>, vector<128x128xf32>, vector<8x128xf32> -> vector<8x128xf32>
    %15 = arith.addf %12, %14 : vector<8x128xf32>
    %c0_12 = arith.constant 0 : index
    %c0_13 = arith.constant 0 : index
    %16 = vector.load %arg12[%c0_12, %c0_13] : memref<8x128xf32, #tpu.memory_space<vmem>>, vector<8x128xf32>
    tpu.vector_store %arg12[%c0_12, %c0_13], %15 {strides = array<i32>} : memref<8x128xf32, #tpu.memory_space<vmem>>, vector<8x128xf32>,
    %c0_i32_14 = arith.constant 0 : i32
    %17 = arith.cmpi eq, %arg2, %c0_i32_14 : i32
    %18 = arith.extui %17 : i1 to i32
    %c0_i32_15 = arith.constant 0 : i32
    %19 = arith.cmpi ne, %18, %c0_i32_15 : i32
    scf.if %19 {
      %c0_16 = arith.constant 0 : index
      %c0_17 = arith.constant 0 : index
      %20 = vector.load %arg9[%c0_16, %c0_17] : memref<1x128xf32, #tpu.memory_space<vmem>>, vector<1x128xf32>
      %c0_18 = arith.constant 0 : index
      %c0_19 = arith.constant 0 : index
      %21 = vector.load %arg10[%c0_18, %c0_19] : memref<1x128xf32, #tpu.memory_space<vmem>>, vector<1x128xf32>
      %c0_20 = arith.constant 0 : index
      %c0_21 = arith.constant 0 : index
      %22 = vector.load %arg8[%c0_20, %c0_21] : memref<1x128xf32, #tpu.memory_space<vmem>>, vector<1x128xf32>
      %23 = arith.mulf %21, %22 : vector<1x128xf32>
      %24 = arith.addf %20, %23 : vector<1x128xf32>
      %c0_22 = arith.constant 0 : index
      %c0_23 = arith.constant 0 : index
      %25 = vector.load %arg12[%c0_22, %c0_23] : memref<8x128xf32, #tpu.memory_space<vmem>>, vector<8x128xf32>
      %26 = vector.broadcast %24 : vector<1x128xf32> to vector<8x128xf32>
      %27 = arith.addf %25, %26 : vector<8x128xf32>
      %c0_24 = arith.constant 0 : index
      %c0_25 = arith.constant 0 : index
      %28 = vector.load %arg11[%c0_24, %c0_25] : memref<8x128xf32, #tpu.memory_space<vmem>>, vector<8x128xf32>
      tpu.vector_store %arg11[%c0_24, %c0_25], %27 {strides = array<i32>} : memref<8x128xf32, #tpu.memory_space<vmem>>, vector<8x128xf32>,
    } else {
    }
    return
  }
  func.func @transform_0(%arg0: i32, %arg1: i32, %arg2: i32) -> (i32, i32) {
    %c0_i32 = arith.constant 0 : i32
    return %arg0, %arg2 : i32, i32
  }
  func.func @transform_1(%arg0: i32, %arg1: i32, %arg2: i32) -> (i32, i32) {
    %c0_i32 = arith.constant 0 : i32
    return %arg1, %arg2 : i32, i32
  }
  func.func @transform_2(%arg0: i32, %arg1: i32, %arg2: i32) -> (i32, i32) {
    %c0_i32 = arith.constant 0 : i32
    return %arg1, %arg2 : i32, i32
  }
  func.func @transform_3(%arg0: i32, %arg1: i32, %arg2: i32) -> (i32, i32) {
    %c0_i32 = arith.constant 0 : i32
    %c0_i32_0 = arith.constant 0 : i32
    return %c0_i32, %arg2 : i32, i32
  }
  func.func @transform_4(%arg0: i32, %arg1: i32, %arg2: i32) -> (i32, i32) {
    %c0_i32 = arith.constant 0 : i32
    %c0_i32_0 = arith.constant 0 : i32
    return %arg1, %c0_i32 : i32, i32
  }
  func.func @transform_5(%arg0: i32, %arg1: i32, %arg2: i32) -> (i32, i32) {
    %c0_i32 = arith.constant 0 : i32
    %c0_i32_0 = arith.constant 0 : i32
    return %c0_i32, %arg1 : i32, i32
  }
  func.func @transform_6(%arg0: i32, %arg1: i32, %arg2: i32) -> (i32, i32) {
    %c0_i32 = arith.constant 0 : i32
    %c0_i32_0 = arith.constant 0 : i32
    return %c0_i32, %arg1 : i32, i32
  }
  func.func @transform_7(%arg0: i32, %arg1: i32, %arg2: i32) -> (i32, i32) {
    %c0_i32 = arith.constant 0 : i32
    %c0_i32_0 = arith.constant 0 : i32
    return %c0_i32, %arg1 : i32, i32
  }
  func.func @transform_8(%arg0: i32, %arg1: i32, %arg2: i32) -> (i32, i32) {
    %c0_i32 = arith.constant 0 : i32
    return %arg0, %arg1 : i32, i32
  }
}

</mosaic_0001>

<llo_original>
// kernel: noisy_linear_forward.1
$region0: #{noisy_linear_forward.1}
  #allocation0 [shape = 'u32[]', space=smem, size = 0x4, offset = 0x4, fixed_abs, tag = 'smem constant byte address 0x4 - core index']
  #allocation1 [shape = 'u32[144,128]{1,0:T(1,128)}', space=vmem, size = 0x12000, scoped, tag = 'internal scratch']
  #allocation2 [shape = 'f32[8,128]{1,0:T(8,128)}', space=vmem, size = 0x1000, scoped, tag = 'scratch operand']
  %s0 = inlined_call_operand.vmem [shape: f32[8,128], index: 0, kind: input, shape index: {}]
  %s1 = inlined_call_operand.vmem [shape: f32[128,128], index: 1, kind: input, shape index: {}]
  %s2 = inlined_call_operand.vmem [shape: f32[128,128], index: 2, kind: input, shape index: {}]
  %s3 = inlined_call_operand.vmem [shape: f32[1,128], index: 3, kind: input, shape index: {}]
  %s4 = inlined_call_operand.vmem [shape: f32[128,1], index: 4, kind: input, shape index: {}]
  %s5 = inlined_call_operand.vmem [shape: f32[1,128], index: 5, kind: input, shape index: {}]
  %s6 = inlined_call_operand.vmem [shape: f32[1,128], index: 6, kind: input, shape index: {}]
  %s7 = inlined_call_operand.vmem [shape: f32[1,128], index: 7, kind: input, shape index: {}]
  %s8 = inlined_call_operand.hbm [shape: f32[8,128], index: 8, kind: output, shape index: {}]
  %s9 = sld [smem:[#allocation0]]
  $region50: #{noisy_linear_forward.1} parent=0
    _
  %s11 = ssub.s32 1, %s9
  %s12 = scalar_select 0, %s11, %s9
  $region1: #{noisy_linear_forward.1} parent=0
    #allocation3 [shape = 'u8[4096]{0}', space=vmem, size = 0x1000, scoped, tag = 'output window, operand 0, single buffered']
    #allocation4 [shape = 's32[1]{0}', space=sflag, size = 0x4, scoped, tag = 'scoped memory for noisy_linear_forward.1']
    %13 = vsyncpa [#allocation4], 0
    // Predicated region
    $region2: #{noisy_linear_forward.1} parent=1 // pred_check
      _
    $region3: #{noisy_linear_forward.1} parent=1 // pred_check_branch
      %15 = sbr.rel (0) target = $region5
    $region4: #{noisy_linear_forward.1} parent=1 // pred_region
      _
    $region5: #{noisy_linear_forward.1} parent=1 // pred_fallthru
      _
    // Predicated region
    $region6: #{noisy_linear_forward.1} parent=1 // pred_check
      _
    $region7: #{noisy_linear_forward.1} parent=1 // pred_check_branch
      %17 = sbr.rel (0) target = $region9
    $region8: #{noisy_linear_forward.1} parent=1 // pred_region
      _
    $region9: #{noisy_linear_forward.1} parent=1 // pred_fallthru
      _
    // Predicated region
    $region10: #{noisy_linear_forward.1} parent=1 // pred_check
      _
    $region11: #{noisy_linear_forward.1} parent=1 // pred_check_branch
      %19 = sbr.rel (0) target = $region13
    $region12: #{noisy_linear_forward.1} parent=1 // pred_region
      _
    $region13: #{noisy_linear_forward.1} parent=1 // pred_fallthru
      _
    // Predicated region
    $region14: #{noisy_linear_forward.1} parent=1 // pred_check
      _
    $region15: #{noisy_linear_forward.1} parent=1 // pred_check_branch
      %21 = sbr.rel (0) target = $region17
    $region16: #{noisy_linear_forward.1} parent=1 // pred_region
      _
    $region17: #{noisy_linear_forward.1} parent=1 // pred_fallthru
      _
    // Predicated region
    $region18: #{noisy_linear_forward.1} parent=1 // pred_check
      _
    $region19: #{noisy_linear_forward.1} parent=1 // pred_check_branch
      %23 = sbr.rel (0) target = $region21
    $region20: #{noisy_linear_forward.1} parent=1 // pred_region
      _
    $region21: #{noisy_linear_forward.1} parent=1 // pred_fallthru
      _
    // Predicated region
    $region22: #{noisy_linear_forward.1} parent=1 // pred_check
      _
    $region23: #{noisy_linear_forward.1} parent=1 // pred_check_branch
      %25 = sbr.rel (0) target = $region25
    $region24: #{noisy_linear_forward.1} parent=1 // pred_region
      _
    $region25: #{noisy_linear_forward.1} parent=1 // pred_fallthru
      _
    // Predicated region
    $region26: #{noisy_linear_forward.1} parent=1 // pred_check
      _
    $region27: #{noisy_linear_forward.1} parent=1 // pred_check_branch
      %27 = sbr.rel (0) target = $region29
    $region28: #{noisy_linear_forward.1} parent=1 // pred_region
      _
    $region29: #{noisy_linear_forward.1} parent=1 // pred_fallthru
      _
    // Predicated region
    $region30: #{noisy_linear_forward.1} parent=1 // pred_check
      _
    $region31: #{noisy_linear_forward.1} parent=1 // pred_check_branch
      %29 = sbr.rel (0) target = $region33
    $region32: #{noisy_linear_forward.1} parent=1 // pred_region
      _
    $region33: #{noisy_linear_forward.1} parent=1 // pred_fallthru
      _
    %p30 = scmp.eq.s32.totalorder 0, 0
    // Predicated region
    $region34: #{noisy_linear_forward.1} parent=1 // pred_check
      %p31 = pneg %p30
    $region35: #{noisy_linear_forward.1} parent=1 // pred_check_branch
      %33 = sbr.rel (%p31) target = $region37
    $region36: #{noisy_linear_forward.1} parent=1 // pred_region
      %34 = vst [vmem:[#allocation2] sm:$0xff] 0.0
    $region37: #{noisy_linear_forward.1} parent=1 // pred_fallthru
      _
    %v35 = vld [vmem:[%s4] sm:$0xff]
    %v36 = vld [vmem:[%s4 + $0x8] sm:$0xff]
    %v37 = vld [vmem:[%s4 + $0x10] sm:$0xff]
    %v38 = vld [vmem:[%s4 + $0x18] sm:$0xff]
    %v39 = vld [vmem:[%s4 + $0x20] sm:$0xff]
    %v40 = vld [vmem:[%s4 + $0x28] sm:$0xff]
    %v41 = vld [vmem:[%s4 + $0x30] sm:$0xff]
    %v42 = vld [vmem:[%s4 + $0x38] sm:$0xff]
    %v43 = vld [vmem:[%s4 + $0x40] sm:$0xff]
    %v44 = vld [vmem:[%s4 + $0x48] sm:$0xff]
    %v45 = vld [vmem:[%s4 + $0x50] sm:$0xff]
    %v46 = vld [vmem:[%s4 + $0x58] sm:$0xff]
    %v47 = vld [vmem:[%s4 + $0x60] sm:$0xff]
    %v48 = vld [vmem:[%s4 + $0x68] sm:$0xff]
    %v49 = vld [vmem:[%s4 + $0x70] sm:$0xff]
    %v50 = vld [vmem:[%s4 + $0x78] sm:$0xff]
    %v51 = vld [vmem:[%s3] sm:$0x1]
    %53 = vset.pattern.permute.xlu0 0
    %54 = vperm.xlu0 %53, %v35
    %v55 = vpop.permute.xlu0 %54
    %58 = vset.pattern.permute.xlu0 0
    %59 = vperm.xlu0 %58, %v36
    %v60 = vpop.permute.xlu0 %59
    %63 = vset.pattern.permute.xlu0 0
    %64 = vperm.xlu0 %63, %v37
    %v65 = vpop.permute.xlu0 %64
    %68 = vset.pattern.permute.xlu0 0
    %69 = vperm.xlu0 %68, %v38
    %v70 = vpop.permute.xlu0 %69
    %73 = vset.pattern.permute.xlu0 0
    %74 = vperm.xlu0 %73, %v39
    %v75 = vpop.permute.xlu0 %74
    %78 = vset.pattern.permute.xlu0 0
    %79 = vperm.xlu0 %78, %v40
    %v80 = vpop.permute.xlu0 %79
    %83 = vset.pattern.permute.xlu0 0
    %84 = vperm.xlu0 %83, %v41
    %v85 = vpop.permute.xlu0 %84
    %88 = vset.pattern.permute.xlu0 0
    %89 = vperm.xlu0 %88, %v42
    %v90 = vpop.permute.xlu0 %89
    %93 = vset.pattern.permute.xlu0 0
    %94 = vperm.xlu0 %93, %v43
    %v95 = vpop.permute.xlu0 %94
    %98 = vset.pattern.permute.xlu0 0
    %99 = vperm.xlu0 %98, %v44
    %v100 = vpop.permute.xlu0 %99
    %103 = vset.pattern.permute.xlu0 0
    %104 = vperm.xlu0 %103, %v45
    %v105 = vpop.permute.xlu0 %104
    %108 = vset.pattern.permute.xlu0 0
    %109 = vperm.xlu0 %108, %v46
    %v110 = vpop.permute.xlu0 %109
    %113 = vset.pattern.permute.xlu0 0
    %114 = vperm.xlu0 %113, %v47
    %v115 = vpop.permute.xlu0 %114
    %118 = vset.pattern.permute.xlu0 0
    %119 = vperm.xlu0 %118, %v48
    %v120 = vpop.permute.xlu0 %119
    %123 = vset.pattern.permute.xlu0 0
    %124 = vperm.xlu0 %123, %v49
    %v125 = vpop.permute.xlu0 %124
    %128 = vset.pattern.permute.xlu0 0
    %129 = vperm.xlu0 %128, %v50
    %v130 = vpop.permute.xlu0 %129
    %v133 = vlaneseq
    %v134 = vshrl.u32 %v133, 7
    %v135 = vsub.s32 0, %v134
    %v136 = vrot.slane %v51, %v135
    %v138 = vmul.f32 %v55, %v136
    %v139 = vmul.f32 %v60, %v136
    %v140 = vmul.f32 %v65, %v136
    %v141 = vmul.f32 %v70, %v136
    %v142 = vmul.f32 %v75, %v136
    %v143 = vmul.f32 %v80, %v136
    %v144 = vmul.f32 %v85, %v136
    %v145 = vmul.f32 %v90, %v136
    %v146 = vmul.f32 %v95, %v136
    %v147 = vmul.f32 %v100, %v136
    %v148 = vmul.f32 %v105, %v136
    %v149 = vmul.f32 %v110, %v136
    %v150 = vmul.f32 %v115, %v136
    %v151 = vmul.f32 %v120, %v136
    %v152 = vmul.f32 %v125, %v136
    %v153 = vmul.f32 %v130, %v136
    %v154 = vld [vmem:[%s1] sm:$0xff]
    %v155 = vld [vmem:[%s1 + $0x8] sm:$0xff]
    %v156 = vld [vmem:[%s1 + $0x10] sm:$0xff]
    %v157 = vld [vmem:[%s1 + $0x18] sm:$0xff]
    %v158 = vld [vmem:[%s1 + $0x20] sm:$0xff]
    %v159 = vld [vmem:[%s1 + $0x28] sm:$0xff]
    %v160 = vld [vmem:[%s1 + $0x30] sm:$0xff]
    %v161 = vld [vmem:[%s1 + $0x38] sm:$0xff]
    %v162 = vld [vmem:[%s1 + $0x40] sm:$0xff]
    %v163 = vld [vmem:[%s1 + $0x48] sm:$0xff]
    %v164 = vld [vmem:[%s1 + $0x50] sm:$0xff]
    %v165 = vld [vmem:[%s1 + $0x58] sm:$0xff]
    %v166 = vld [vmem:[%s1 + $0x60] sm:$0xff]
    %v167 = vld [vmem:[%s1 + $0x68] sm:$0xff]
    %v168 = vld [vmem:[%s1 + $0x70] sm:$0xff]
    %v169 = vld [vmem:[%s1 + $0x78] sm:$0xff]
    %v170 = vld [vmem:[%s2] sm:$0xff]
    %v171 = vld [vmem:[%s2 + $0x8] sm:$0xff]
    %v172 = vld [vmem:[%s2 + $0x10] sm:$0xff]
    %v173 = vld [vmem:[%s2 + $0x18] sm:$0xff]
    %v174 = vld [vmem:[%s2 + $0x20] sm:$0xff]
    %v175 = vld [vmem:[%s2 + $0x28] sm:$0xff]
    %v176 = vld [vmem:[%s2 + $0x30] sm:$0xff]
    %v177 = vld [vmem:[%s2 + $0x38] sm:$0xff]
    %v178 = vld [vmem:[%s2 + $0x40] sm:$0xff]
    %v179 = vld [vmem:[%s2 + $0x48] sm:$0xff]
    %v180 = vld [vmem:[%s2 + $0x50] sm:$0xff]
    %v181 = vld [vmem:[%s2 + $0x58] sm:$0xff]
    %v182 = vld [vmem:[%s2 + $0x60] sm:$0xff]
    %v183 = vld [vmem:[%s2 + $0x68] sm:$0xff]
    %v184 = vld [vmem:[%s2 + $0x70] sm:$0xff]
    %v185 = vld [vmem:[%s2 + $0x78] sm:$0xff]
    %v186 = vmul.f32 %v170, %v138
    %v187 = vmul.f32 %v171, %v139
    %v188 = vmul.f32 %v172, %v140
    %v189 = vmul.f32 %v173, %v141
    %v190 = vmul.f32 %v174, %v142
    %v191 = vmul.f32 %v175, %v143
    %v192 = vmul.f32 %v176, %v144
    %v193 = vmul.f32 %v177, %v145
    %v194 = vmul.f32 %v178, %v146
    %v195 = vmul.f32 %v179, %v147
    %v196 = vmul.f32 %v180, %v148
    %v197 = vmul.f32 %v181, %v149
    %v198 = vmul.f32 %v182, %v150
    %v199 = vmul.f32 %v183, %v151
    %v200 = vmul.f32 %v184, %v152
    %v201 = vmul.f32 %v185, %v153
    %v202 = vadd.f32 %v154, %v186
    %v203 = vadd.f32 %v155, %v187
    %v204 = vadd.f32 %v156, %v188
    %v205 = vadd.f32 %v157, %v189
    %v206 = vadd.f32 %v158, %v190
    %v207 = vadd.f32 %v159, %v191
    %v208 = vadd.f32 %v160, %v192
    %v209 = vadd.f32 %v161, %v193
    %v210 = vadd.f32 %v162, %v194
    %v211 = vadd.f32 %v163, %v195
    %v212 = vadd.f32 %v164, %v196
    %v213 = vadd.f32 %v165, %v197
    %v214 = vadd.f32 %v166, %v198
    %v215 = vadd.f32 %v167, %v199
    %v216 = vadd.f32 %v168, %v200
    %v217 = vadd.f32 %v169, %v201
    %v218 = vld [vmem:[#allocation2] sm:$0xff]
    %v219 = vld [vmem:[%s0] sm:$0xff]
    %220 = vmatprep.subr.mxu0 0.0
    %221 = vmatpush1.xpose.msra.mxu0 %v217
    %222 = vmatprep.subr.mxu0 0.0
    %223 = vmatpush1.xpose.msra.mxu0 %v216
    %224 = vmatprep.subr.mxu0 0.0
    %225 = vmatpush1.xpose.msra.mxu0 %v215
    %226 = vmatprep.subr.mxu0 0.0
    %227 = vmatpush1.xpose.msra.mxu0 %v214
    %228 = vmatprep.subr.mxu0 0.0
    %229 = vmatpush1.xpose.msra.mxu0 %v213
    %230 = vmatprep.subr.mxu0 0.0
    %231 = vmatpush1.xpose.msra.mxu0 %v212
    %232 = vmatprep.subr.mxu0 0.0
    %233 = vmatpush1.xpose.msra.mxu0 %v211
    %234 = vmatprep.subr.mxu0 0.0
    %235 = vmatpush1.xpose.msra.mxu0 %v210
    %236 = vmatprep.subr.mxu0 0.0
    %237 = vmatpush1.xpose.msra.mxu0 %v209
    %238 = vmatprep.subr.mxu0 0.0
    %239 = vmatpush1.xpose.msra.mxu0 %v208
    %240 = vmatprep.subr.mxu0 0.0
    %241 = vmatpush1.xpose.msra.mxu0 %v207
    %242 = vmatprep.subr.mxu0 0.0
    %243 = vmatpush1.xpose.msra.mxu0 %v206
    %244 = vmatprep.subr.mxu0 0.0
    %245 = vmatpush1.xpose.msra.mxu0 %v205
    %246 = vmatprep.subr.mxu0 0.0
    %247 = vmatpush1.xpose.msra.mxu0 %v204
    %248 = vmatprep.subr.mxu0 0.0
    %249 = vmatpush1.xpose.msra.mxu0 %v203
    %250 = vmatprep.subr.mxu0 0.0
    %251 = vmatpush1.xpose.msra.mxu0 %v202
    %252 = vmatprep.subr.mxu0 0.0
    %253 = vmatpush2.xpose.msra.mxu0 0.0
    %254 = vmatprep.subr.mxu0 0.0
    %255 = vmatpush2.xpose.msra.mxu0 0.0
    %256 = vmatprep.subr.mxu0 0.0
    %257 = vmatpush2.xpose.msra.mxu0 0.0
    %258 = vmatprep.subr.mxu0 0.0
    %259 = vmatpush2.xpose.msra.mxu0 0.0
    %260 = vmatprep.subr.mxu0 0.0
    %261 = vmatpush2.xpose.msra.mxu0 0.0
    %262 = vmatprep.subr.mxu0 0.0
    %263 = vmatpush2.xpose.msra.mxu0 0.0
    %264 = vmatprep.subr.mxu0 0.0
    %265 = vmatpush2.xpose.msra.mxu0 0.0
    %266 = vmatprep.subr.mxu0 0.0
    %267 = vmatpush2.xpose.msra.mxu0 0.0
    %268 = vmatprep.subr.mxu0 0.0
    %269 = vmatpush2.xpose.msra.mxu0 0.0
    %270 = vmatprep.subr.mxu0 0.0
    %271 = vmatpush2.xpose.msra.mxu0 0.0
    %272 = vmatprep.subr.mxu0 0.0
    %273 = vmatpush2.xpose.msra.mxu0 0.0
    %274 = vmatprep.subr.mxu0 0.0
    %275 = vmatpush2.xpose.msra.mxu0 0.0
    %276 = vmatprep.subr.mxu0 0.0
    %277 = vmatpush2.xpose.msra.mxu0 0.0
    %278 = vmatprep.subr.mxu0 0.0
    %279 = vmatpush2.xpose.msra.mxu0 0.0
    %280 = vmatprep.subr.mxu0 0.0
    %281 = vmatpush2.xpose.msra.mxu0 0.0
    %282 = vmatprep.subr.mxu0 0.0
    %283 = vmatpush2.xpose.msra.mxu0 0.0
    %284 = vmatprep.mubr.f32.mxu0 0.0
    %285 = vmatmul.mubr.f32.gmra.mxu0 %v219
    %v286 = vpop.f32.mrf.mxu0
    %v287 = vadd.f32 0.0, %v286
    %v288 = vpop.f32.mrf.mxu0
    %289 = vdwg.mxu0
    %v290 = vadd.f32 %v218, %v287
    %291 = vst [vmem:[#allocation2] sm:$0xff] %v290
    // Predicated region
    $region38: #{noisy_linear_forward.1} parent=1 // pred_check
      %p292 = pneg %p30
    $region39: #{noisy_linear_forward.1} parent=1 // pred_check_branch
      %294 = sbr.rel (%p292) target = $region41
    $region40: #{noisy_linear_forward.1} parent=1 // pred_region
      %v295 = vld [vmem:[%s6] sm:$0x1]
      %v296 = vld [vmem:[%s7] sm:$0x1]
      %v297 = vld [vmem:[%s5] sm:$0x1]
      %v298 = vmul.f32 %v296, %v297
      %v299 = vadd.f32 %v295, %v298
      %v300 = vld [vmem:[#allocation2] sm:$0xff]
      %v302 = vlaneseq
      %v303 = vshrl.u32 %v302, 7
      %v304 = vsub.s32 0, %v303
      %v305 = vrot.slane %v299, %v304
      %v307 = vadd.f32 %v300, %v305
      %308 = vst [vmem:[#allocation3] sm:$0xff] %v307
    $region41: #{noisy_linear_forward.1} parent=1 // pred_fallthru
      _
    // Predicated region
    $region42: #{noisy_linear_forward.1} parent=1 // pred_check
      _
    $region43: #{noisy_linear_forward.1} parent=1 // pred_check_branch
      %310 = sbr.rel (0) target = $region45
    $region44: #{noisy_linear_forward.1} parent=1 // pred_region
      %s312 = ssub.s32 128, 128
      %313 = vsyncadd [#allocation4], %s312
      %s315 = sshll.u32 [#allocation3], 4
      %s316 = int_to_ptr.vmem [resolvable:$true] %s315
      %318 = dma.vmem_to_hbm [thread:$0]  %s316, 128, %s8, [#allocation4]
    $region45: #{noisy_linear_forward.1} parent=1 // pred_fallthru
      _
    // Predicated region
    $region46: #{noisy_linear_forward.1} parent=1 // pred_check
      _
    $region47: #{noisy_linear_forward.1} parent=1 // pred_check_branch
      %320 = sbr.rel (0) target = $region49
    $region48: #{noisy_linear_forward.1} parent=1 // pred_region
      %321 = dma.done [#allocation4], 128
    $region49: #{noisy_linear_forward.1} parent=1 // pred_fallthru
      _
    %322 = vsyncpa [#allocation4], 1

</llo_original>
